<compile_context>
chip_gen: v6e
topology: v6e:2x2x1
jax: 0.10.0
libtpu: 0.0.40
codegen_flags: <defaults>
</compile_context>

<pallas_src>
import math

import jax
import jax.numpy as jnp
from jax.experimental import pallas as pl
from jax.experimental.pallas import tpu as pltpu

try:
    _MS = pltpu.MemorySpace
except AttributeError:          # older jax spelling
    _MS = pltpu.TPUMemorySpace


def _round_up(x, m):
    return ((x + m - 1) // m) * m


def _vmem_capacity_bytes():
    """Physical VMEM per core; conservative fallback if the query fails."""
    try:
        return int(pltpu.get_tpu_info().vmem_capacity_bytes)
    except Exception:
        return 64 << 20          # v7x per-core VMEM (smallest current gen)


def _pick_tile(n_tok, cap):
    """Largest multiple of 8 <= cap, preferring a divisor of n_tok (no padding)."""
    cap = max(8, (cap // 8) * 8)
    if n_tok >= 8 and n_tok % 8 == 0:
        limit = min(cap, (n_tok // 8) * 8)
        for t in range(limit, 7, -8):
            if n_tok % t == 0:
                return t, n_tok               # exact tiling, no padded rows
    t = min(cap, _round_up(max(n_tok, 1), 8))
    return t, _round_up(max(n_tok, 1), t)


def _make_onehot_kernel(vocab, scale, out_dtype):
    def kernel(ids_ref, emb_ref, out_ref):
        # ids_ref: (T, 1) int32 tile   emb_ref: (V, D) VMEM-resident   out_ref: (T, D)
        T = out_ref.shape[0]
        ids = ids_ref[...]                                             # (T, 1)
        eq = jax.lax.broadcasted_iota(jnp.int32, (T, vocab), 1) == ids  # (T, V)
        onehot = eq.astype(emb_ref.dtype)
        # Scale on the f32 accumulator (not folded into the one-hot): keeps the
        # MXU operand exactly 1.0/0.0 and the scale in full f32 precision.
        acc = jnp.dot(onehot, emb_ref[...], preferred_element_type=jnp.float32)
        out_ref[...] = (acc * scale).astype(out_dtype)
    return kernel


def _make_gather_kernel(tile, scale, out_dtype):
    def kernel(ids_ref, emb_hbm, out_ref, stage_ref, sem):
        # ids_ref: (n_pad,) int32 in SMEM (scalar prefetch)
        # emb_hbm: (V, D) ref left in HBM; stage_ref: (tile, D) VMEM; sem: DMA sem
        base = pl.program_id(0) * tile

        def issue(t, carry):
            row = ids_ref[base + t]
            pltpu.make_async_copy(emb_hbm.at[row], stage_ref.at[t], sem.at[0]).start()
            return carry
        jax.lax.fori_loop(0, tile, issue, 0)

        def drain(t, carry):
            # Wait descriptor only needs matching sizes; every row copy is equal.
            pltpu.make_async_copy(emb_hbm.at[0], stage_ref.at[t], sem.at[0]).wait()
            return carry
        jax.lax.fori_loop(0, tile, drain, 0)

        out_ref[...] = (stage_ref[...].astype(jnp.float32) * scale).astype(out_dtype)
    return kernel


def word_embedding_pallas(ids, emb_table, n_units, *, max_tokens_per_tile=512,
                          force_gather=False):
    """out[b, s, :] = emb_table[ids[b, s], :] * sqrt(n_units)."""
    B, S = ids.shape
    V, D = emb_table.shape
    assert D == n_units
    scale = float(math.sqrt(float(n_units)))
    out_dtype = emb_table.dtype
    itemsize = jnp.dtype(emb_table.dtype).itemsize

    n_tok = B * S
    vmem_cap = _vmem_capacity_bytes()
    usable = int(vmem_cap * 0.85)
    is_float = bool(jnp.issubdtype(emb_table.dtype, jnp.floating))
    table_bytes = V * D * itemsize

    # ---- one-hot path sizing ------------------------------------------------
    # Cap T so the in-kernel (T, V) one-hot stays within ~2 MiB of vregs/VMEM.
    onehot_cap = max(8, ((2 << 20) // max(4 * V, 1)) // 8 * 8)
    cap = min(max_tokens_per_tile, onehot_cap)
    if n_tok > 256:
        # make >= 2 tiles so the "parallel" axis can shard across both v7x TCs
        cap = min(cap, max(8, ((n_tok + 1) // 2) // 8 * 8))
    T, n_pad = _pick_tile(n_tok, cap)

    onehot_vmem = (table_bytes                  # VMEM-resident table, single buffer
                   + 2 * T * 128 * 4            # (T,1) int32 id tiles (lane padded) x2
                   + 2 * T * D * itemsize       # output tiles, double buffered
                   + T * V * 4                  # (T,V) one-hot intermediate
                   + T * D * 4                  # f32 matmul accumulator
                   + (2 << 20))                 # internal-scratch margin

    use_gather = force_gather or (not is_float) or (V > 4096) or (onehot_vmem > usable)

    if use_gather:
        # ---- DMA row-gather path (table stays in HBM) ------------------------
        T, n_pad = _pick_tile(n_tok, min(128, max_tokens_per_tile))
        n_tiles = n_pad // T

        flat_ids = jnp.clip(ids.reshape(-1).astype(jnp.int32), 0, V - 1)
        if n_pad != n_tok:
            flat_ids = jnp.pad(flat_ids, (0, n_pad - n_tok))

        out_flat = pl.pallas_call(
            _make_gather_kernel(T, scale, out_dtype),
            out_shape=jax.ShapeDtypeStruct((n_pad, D), out_dtype),
            grid_spec=pltpu.PrefetchScalarGridSpec(
                num_scalar_prefetch=1,
                grid=(n_tiles,),
                in_specs=[pl.BlockSpec(memory_space=pl.ANY)],       # table in HBM
                out_specs=pl.BlockSpec((T, D), lambda i, ids_sm: (i, 0)),
                scratch_shapes=[pltpu.VMEM((T, D), emb_table.dtype),
                                pltpu.SemaphoreType.DMA((1,))],
            ),
            compiler_params=pltpu.CompilerParams(
                dimension_semantics=("arbitrary",),
            ),
            cost_estimate=pl.CostEstimate(
                flops=n_pad * D,
                transcendentals=0,
                bytes_accessed=n_pad * 4 + 2 * n_pad * D * itemsize,
            ),
        )(flat_ids, emb_table)
    else:
        # ---- VMEM-resident table + one-hot MXU gather -------------------------
        n_tiles = n_pad // T
        flat_ids = ids.reshape(-1).astype(jnp.int32)
        if n_pad != n_tok:
            flat_ids = jnp.pad(flat_ids, (0, n_pad - n_tok))
        ids2d = flat_ids.reshape(n_pad, 1)

        cp_kwargs = {}
        if onehot_vmem > (16 << 20):     # above the smallest (v5e) default scoped limit
            cp_kwargs["vmem_limit_bytes"] = int(
                min(max(onehot_vmem * 3 // 2, 32 << 20), vmem_cap - (4 << 20)))

        out_flat = pl.pallas_call(
            _make_onehot_kernel(V, scale, out_dtype),
            out_shape=jax.ShapeDtypeStruct((n_pad, D), out_dtype),
            grid_spec=pltpu.PrefetchScalarGridSpec(
                num_scalar_prefetch=0,
                grid=(n_tiles,),
                in_specs=[
                    pl.BlockSpec((T, 1), lambda i: (i, 0)),
                    # Whole table resident in VMEM: single buffer, one HBM read.
                    pl.BlockSpec(memory_space=_MS.VMEM),
                ],
                out_specs=pl.BlockSpec((T, D), lambda i: (i, 0)),
            ),
            compiler_params=pltpu.CompilerParams(
                dimension_semantics=("parallel",),
                **cp_kwargs,
            ),
            cost_estimate=pl.CostEstimate(
                flops=n_pad * D,          # advisory: the scale, not fake T*V*D MACs
                transcendentals=0,
                bytes_accessed=n_pad * 4 + table_bytes + n_pad * D * itemsize,
            ),
        )(ids2d, emb_table)

    if n_pad != n_tok:
        out_flat = out_flat[:n_tok]
    return out_flat.reshape(B, S, D)
    # TODO(synk): torch.nn.Embedding raises on out-of-range ids; in-kernel we
    # cannot raise, so OOB ids yield a zero row (one-hot path) / clamped row (DMA path).


if __name__ == "__main__":
    # Shapes consistent with the module: vocab=64, n_units=128, batch=2, seq=8
    vocab = 64
    n_units = 128
    batch, seq = 2, 8

    key = jax.random.PRNGKey(0)
    k_emb, k_ids = jax.random.split(key)

    # nn.Embedding default init: N(0, 1)
    emb_table = jax.random.normal(k_emb, (vocab, n_units), dtype=jnp.float32)
    ids = jax.random.randint(k_ids, (batch, seq), 0, vocab, dtype=jnp.int32)

    ref = emb_table[ids] * math.sqrt(n_units)

    # Path 1: VMEM-resident table + one-hot MXU gather (default for small vocab).
    out = jax.block_until_ready(word_embedding_pallas(ids, emb_table, n_units))
    assert out.shape == (batch, seq, n_units)
    assert jnp.allclose(out, ref, atol=1e-5, rtol=1e-5), float(jnp.max(jnp.abs(out - ref)))

    # Path 2: HBM table + scalar-prefetched ids + per-row DMA gather
    # (large-vocab / non-float fallback), forced here to validate it end-to-end.
    out_g = jax.block_until_ready(
        word_embedding_pallas(ids, emb_table, n_units, force_gather=True))
    assert jnp.allclose(out_g, ref, atol=1e-5, rtol=1e-5), float(jnp.max(jnp.abs(out_g - ref)))

    # Padding/slicing path: token count not a multiple of 8.
    ids_odd = jax.random.randint(k_ids, (3, 5), 0, vocab, dtype=jnp.int32)
    ref_odd = emb_table[ids_odd] * math.sqrt(n_units)
    out_odd = jax.block_until_ready(word_embedding_pallas(ids_odd, emb_table, n_units))
    assert jnp.allclose(out_odd, ref_odd, atol=1e-5, rtol=1e-5)

    print("KERNEL_OK")
</pallas_src>

<mosaic_0001>
module attributes {stable_mosaic.version = 11 : i64} {
  func.func @kernel(%arg0: i32, %arg1: memref<16x1xi32, #tpu.memory_space<vmem>>, %arg2: memref<64x128xf32, #tpu.memory_space<vmem>>, %arg3: memref<16x128xf32, #tpu.memory_space<vmem>>) attributes {dimension_semantics = [#tpu.dimension_semantics<parallel>], iteration_bounds = array<i64: 1>, scalar_prefetch = 0 : i64, scratch_operands = 0 : i64, tpu.core_type = #tpu.core_type<tc>, window_params = [{transform_indices = @transform_0, window_bounds = array<i64: 16, 1>}, {pipeline_mode = #tpu.pipeline_mode<synchronous>, transform_indices = @transform_1, window_bounds = array<i64: 64, 128>}, {transform_indices = @transform_2, window_bounds = array<i64: 16, 128>}]} {
    %c0 = arith.constant 0 : index
    %c0_0 = arith.constant 0 : index
    %0 = vector.load %arg1[%c0, %c0_0] : memref<16x1xi32, #tpu.memory_space<vmem>>, vector<16x1xi32>
    %1 = tpu.iota {dimensions = array<i32: 1>} : vector<16x64xi32>
    %2 = vector.broadcast %0 : vector<16x1xi32> to vector<16x64xi32>
    %3 = arith.cmpi eq, %1, %2 : vector<16x64xi32>
    %4 = arith.extui %3 : vector<16x64xi1> to vector<16x64xi32>
    %5 = arith.sitofp %4 : vector<16x64xi32> to vector<16x64xf32>
    %c0_1 = arith.constant 0 : index
    %c0_2 = arith.constant 0 : index
    %6 = vector.load %arg2[%c0_1, %c0_2] : memref<64x128xf32, #tpu.memory_space<vmem>>, vector<64x128xf32>
    %cst = arith.constant dense<0.000000e+00> : vector<16x128xf32>
    %7 = tpu.matmul %5, %6, %cst {dimension_numbers = #tpu.dot_dimension_numbers<[1], [0], [0], [1], [0, 0, 1, 1], [], []>} : vector<16x64xf32>, vector<64x128xf32>, vector<16x128xf32> -> vector<16x128xf32>
    %cst_3 = arith.constant 11.3137083 : f32
    %8 = vector.broadcast %cst_3 : f32 to vector<16x128xf32>
    %9 = arith.mulf %7, %8 : vector<16x128xf32>
    %c0_4 = arith.constant 0 : index
    %c0_5 = arith.constant 0 : index
    %10 = vector.load %arg3[%c0_4, %c0_5] : memref<16x128xf32, #tpu.memory_space<vmem>>, vector<16x128xf32>
    tpu.vector_store %arg3[%c0_4, %c0_5], %9 {strides = array<i32>} : memref<16x128xf32, #tpu.memory_space<vmem>>, vector<16x128xf32>,
    return
  }
  func.func @transform_0(%arg0: i32) -> (i32, i32) {
    %c0_i32 = arith.constant 0 : i32
    %c0_i32_0 = arith.constant 0 : i32
    return %arg0, %c0_i32 : i32, i32
  }
  func.func @transform_1(%arg0: i32) -> (i32, i32) {
    %c0_i32 = arith.constant 0 : i32
    %c0_i32_0 = arith.constant 0 : i32
    %c0_i32_1 = arith.constant 0 : i32
    return %c0_i32, %c0_i32_0 : i32, i32
  }
  func.func @transform_2(%arg0: i32) -> (i32, i32) {
    %c0_i32 = arith.constant 0 : i32
    %c0_i32_0 = arith.constant 0 : i32
    return %arg0, %c0_i32 : i32, i32
  }
}

</mosaic_0001>

<llo_original>
// kernel: tpu_custom_call.1
$region0: #{tpu_custom_call.1}
  #allocation0 [shape = 'u32[]', space=smem, size = 0x4, offset = 0x4, fixed_abs, tag = 'smem constant byte address 0x4 - core index']
  #allocation1 [shape = 'u32[144,128]{1,0:T(1,128)}', space=vmem, size = 0x12000, scoped, tag = 'internal scratch']
  %s0 = inlined_call_operand.vmem [shape: s32[16,1], index: 0, kind: input, shape index: {}]
  %s1 = inlined_call_operand.hbm [shape: f32[64,128], index: 1, kind: input, shape index: {}]
  %s2 = inlined_call_operand.hbm [shape: f32[16,128], index: 2, kind: output, shape index: {}]
  %s3 = sld [smem:[#allocation0]]
  $region22: #{tpu_custom_call.1} parent=0
    _
  %s5 = ssub.s32 1, %s3
  %s6 = scalar_select 0, %s5, %s3
  $region1: #{tpu_custom_call.1} parent=0
    #allocation2 [shape = 'u8[32768]{0}', space=vmem, size = 0x8000, scoped, tag = 'input window, operand 1, single buffered']
    #allocation3 [shape = 's32[1]{0}', space=sflag, size = 0x4, scoped, tag = 'scoped memory for tpu_custom_call.1']
    #allocation4 [shape = 's32[1]{0}', space=sflag, size = 0x4, scoped, tag = 'scoped memory for tpu_custom_call.1']
    #allocation5 [shape = 'u8[8192]{0}', space=vmem, size = 0x2000, scoped, tag = 'output window, operand 0, single buffered']
    %7 = vsyncpa [#allocation3], 0
    %8 = vsyncpa [#allocation4], 0
    // Predicated region
    $region2: #{tpu_custom_call.1} parent=1 // pred_check
      _
    $region3: #{tpu_custom_call.1} parent=1 // pred_check_branch
      %10 = sbr.rel (0) target = $region5
    $region4: #{tpu_custom_call.1} parent=1 // pred_region
      _
    $region5: #{tpu_custom_call.1} parent=1 // pred_fallthru
      _
    // Predicated region
    $region6: #{tpu_custom_call.1} parent=1 // pred_check
      _
    $region7: #{tpu_custom_call.1} parent=1 // pred_check_branch
      %12 = sbr.rel (0) target = $region9
    $region8: #{tpu_custom_call.1} parent=1 // pred_region
      %s14 = ssub.s32 1024, 1024
      %15 = vsyncadd [#allocation3], %s14
      %s16 = sshll.u32 [#allocation2], 4
      %s17 = int_to_ptr.vmem [resolvable:$true] %s16
      %22 = dma.hbm_to_vmem [thread:$0]  %s1, 1024, %s17, [#allocation3], 128, 128, 8
    $region9: #{tpu_custom_call.1} parent=1 // pred_fallthru
      _
    // Predicated region
    $region10: #{tpu_custom_call.1} parent=1 // pred_check
      _
    $region11: #{tpu_custom_call.1} parent=1 // pred_check_branch
      %24 = sbr.rel (0) target = $region13
    $region12: #{tpu_custom_call.1} parent=1 // pred_region
      %25 = dma.done [#allocation3], 1024
    $region13: #{tpu_custom_call.1} parent=1 // pred_fallthru
      _
    %v26 = vld [vmem:[%s0] sm:$0xff]
    %v27 = vld [vmem:[%s0 + $0x8] sm:$0xff]
    %v28 = vlaneseq
    %v29 = vand.u32 %v28, 127
    %30 = vset.pattern.permute.xlu0 0
    %31 = vperm.xlu0 %30, %v26
    %v32 = vpop.permute.xlu0 %31
    %33 = vset.pattern.permute.xlu0 0
    %34 = vperm.xlu0 %33, %v27
    %v35 = vpop.permute.xlu0 %34
    %vm36 = vcmp.eq.s32.totalorder %v29, %v32
    %vm37 = vcmp.eq.s32.totalorder %v29, %v35
    %v38 = vsel %vm36, 1, 0
    %v39 = vsel %vm37, 1, 0
    %v40 = vcvt.s32.f32 %v38
    %v41 = vcvt.s32.f32 %v39
    %v42 = vld [vmem:[#allocation2] sm:$0xff]
    %v43 = vld [vmem:[#allocation2 + $0x8] sm:$0xff]
    %v44 = vld [vmem:[#allocation2 + $0x10] sm:$0xff]
    %v45 = vld [vmem:[#allocation2 + $0x18] sm:$0xff]
    %v46 = vld [vmem:[#allocation2 + $0x20] sm:$0xff]
    %v47 = vld [vmem:[#allocation2 + $0x28] sm:$0xff]
    %v48 = vld [vmem:[#allocation2 + $0x30] sm:$0xff]
    %v49 = vld [vmem:[#allocation2 + $0x38] sm:$0xff]
    %vm50 = vcmask 523264
    %v52 = vsel %vm50, %v40, 0
    %v55 = vsel %vm50, %v41, 0
    %57 = vmatprep.subr.mxu0 0.0
    %58 = vmatpush1.msra.mxu0 0.0
    %59 = vmatprep.subr.mxu0 0.0
    %60 = vmatpush1.msra.mxu0 0.0
    %61 = vmatprep.subr.mxu0 0.0
    %62 = vmatpush1.msra.mxu0 0.0
    %63 = vmatprep.subr.mxu0 0.0
    %64 = vmatpush1.msra.mxu0 0.0
    %65 = vmatprep.subr.mxu0 0.0
    %66 = vmatpush1.msra.mxu0 0.0
    %67 = vmatprep.subr.mxu0 0.0
    %68 = vmatpush1.msra.mxu0 0.0
    %69 = vmatprep.subr.mxu0 0.0
    %70 = vmatpush1.msra.mxu0 0.0
    %71 = vmatprep.subr.mxu0 0.0
    %72 = vmatpush1.msra.mxu0 0.0
    %73 = vmatprep.subr.mxu0 0.0
    %74 = vmatpush1.msra.mxu0 %v49
    %75 = vmatprep.subr.mxu0 0.0
    %76 = vmatpush1.msra.mxu0 %v48
    %77 = vmatprep.subr.mxu0 0.0
    %78 = vmatpush1.msra.mxu0 %v47
    %79 = vmatprep.subr.mxu0 0.0
    %80 = vmatpush1.msra.mxu0 %v46
    %81 = vmatprep.subr.mxu0 0.0
    %82 = vmatpush1.msra.mxu0 %v45
    %83 = vmatprep.subr.mxu0 0.0
    %84 = vmatpush1.msra.mxu0 %v44
    %85 = vmatprep.subr.mxu0 0.0
    %86 = vmatpush1.msra.mxu0 %v43
    %87 = vmatprep.subr.mxu0 0.0
    %88 = vmatpush1.msra.mxu0 %v42
    %89 = vmatprep.subr.mxu0 0.0
    %90 = vmatpush2.msra.mxu0 0.0
    %91 = vmatprep.subr.mxu0 0.0
    %92 = vmatpush2.msra.mxu0 0.0
    %93 = vmatprep.subr.mxu0 0.0
    %94 = vmatpush2.msra.mxu0 0.0
    %95 = vmatprep.subr.mxu0 0.0
    %96 = vmatpush2.msra.mxu0 0.0
    %97 = vmatprep.subr.mxu0 0.0
    %98 = vmatpush2.msra.mxu0 0.0
    %99 = vmatprep.subr.mxu0 0.0
    %100 = vmatpush2.msra.mxu0 0.0
    %101 = vmatprep.subr.mxu0 0.0
    %102 = vmatpush2.msra.mxu0 0.0
    %103 = vmatprep.subr.mxu0 0.0
    %104 = vmatpush2.msra.mxu0 0.0
    %105 = vmatprep.subr.mxu0 0.0
    %106 = vmatpush2.msra.mxu0 0.0
    %107 = vmatprep.subr.mxu0 0.0
    %108 = vmatpush2.msra.mxu0 0.0
    %109 = vmatprep.subr.mxu0 0.0
    %110 = vmatpush2.msra.mxu0 0.0
    %111 = vmatprep.subr.mxu0 0.0
    %112 = vmatpush2.msra.mxu0 0.0
    %113 = vmatprep.subr.mxu0 0.0
    %114 = vmatpush2.msra.mxu0 0.0
    %115 = vmatprep.subr.mxu0 0.0
    %116 = vmatpush2.msra.mxu0 0.0
    %117 = vmatprep.subr.mxu0 0.0
    %118 = vmatpush2.msra.mxu0 0.0
    %119 = vmatprep.subr.mxu0 0.0
    %120 = vmatpush2.msra.mxu0 0.0
    %121 = vmatprep.mubr.f32.mxu0 0.0
    %122 = vmatmul.mubr.f32.gmra.mxu0 %v52
    %v123 = vpop.f32.mrf.mxu0
    %v124 = vadd.f32 0.0, %v123
    %v125 = vpop.f32.mrf.mxu0
    %126 = vmatprep.mubr.f32.mxu0 0.0
    %127 = vmatmul.mubr.f32.gmra.mxu0 %v55
    %v128 = vpop.f32.mrf.mxu0
    %v129 = vadd.f32 0.0, %v128
    %v130 = vpop.f32.mrf.mxu0
    %131 = vdwg.mxu0
    %v132 = vmul.f32 %v124, 11.313708
    %v133 = vmul.f32 %v129, 11.313708
    %134 = vst [vmem:[#allocation5] sm:$0xff] %v132
    %135 = vst [vmem:[#allocation5 + $0x8] sm:$0xff] %v133
    // Predicated region
    $region14: #{tpu_custom_call.1} parent=1 // pred_check
      _
    $region15: #{tpu_custom_call.1} parent=1 // pred_check_branch
      %137 = sbr.rel (0) target = $region17
    $region16: #{tpu_custom_call.1} parent=1 // pred_region
      %s139 = ssub.s32 256, 256
      %140 = vsyncadd [#allocation4], %s139
      %s141 = sshll.u32 [#allocation5], 4
      %s142 = int_to_ptr.vmem [resolvable:$true] %s141
      %147 = dma.vmem_to_hbm [thread:$0]  %s142, 256, %s2, [#allocation4], 128, 128, 8
    $region17: #{tpu_custom_call.1} parent=1 // pred_fallthru
      _
    // Predicated region
    $region18: #{tpu_custom_call.1} parent=1 // pred_check
      _
    $region19: #{tpu_custom_call.1} parent=1 // pred_check_branch
      %149 = sbr.rel (0) target = $region21
    $region20: #{tpu_custom_call.1} parent=1 // pred_region
      %150 = dma.done [#allocation4], 256
    $region21: #{tpu_custom_call.1} parent=1 // pred_fallthru
      _
    %151 = vsyncpa [#allocation3], 1
    %152 = vsyncpa [#allocation4], 1

</llo_original>
